<compile_context>
chip_gen: v6e
topology: v6e:2x2x1
jax: 0.10.0
libtpu: 0.0.40
codegen_flags: <defaults>
</compile_context>

<pallas_src>
import jax
import jax.numpy as jnp
from jax.experimental import pallas as pl
from jax.experimental.pallas import tpu as pltpu


def value_head_kernel(x_ref, w_ref, b_ref, o_ref):
    # x_ref: (tb, D) VMEM tile (streamed), w_ref: (1, D) VMEM (resident),
    # b_ref: (1,) SMEM scalar, o_ref: (tb, 1) VMEM output tile.
    prod = x_ref[...] * w_ref[...]                                  # VPU, native dtype
    acc = jnp.sum(prod, axis=-1, keepdims=True, dtype=jnp.float32)  # f32 accumulation
    o_ref[...] = (acc + b_ref[0]).astype(o_ref.dtype)


def _round_up(n: int, m: int) -> int:
    return ((n + m - 1) // m) * m


def _sublane_multiple(dtype) -> int:
    # Min sublane tiling: 8 rows for 32-bit, 16 for 16-bit, 32 for 8-bit dtypes.
    return {4: 8, 2: 16, 1: 32}.get(jnp.dtype(dtype).itemsize, 8)


def _chip_config():
    try:
        kind = jax.devices()[0].device_kind.lower()
    except Exception:
        kind = ""
    if "7" in kind:
        # v7x: 64 MiB VMEM per TensorCore and 2 TCs/chip.
        #   2 x 8 MiB double-buffered input tile + <=8 MiB product temp << 48 MiB.
        return {
            "tile_budget": 8 * 1024 * 1024,
            "vmem_limit": 48 * 1024 * 1024,
            "dims": (pltpu.CORE_PARALLEL,),   # shard the batch grid across both TCs
        }
    # v5e / v6e: 128 MiB physical VMEM -> go bigger to amortize per-step overhead.
    return {
        "tile_budget": 16 * 1024 * 1024,
        "vmem_limit": 64 * 1024 * 1024,
        "dims": ("parallel",),                # harmless on single-TC parts
    }


def value_head(x: jax.Array, w_row: jax.Array, b: jax.Array) -> jax.Array:
    """x: (B, D), w_row: (1, D) torch-layout weight, b: (1,) -> value: (B,)"""
    B, D = x.shape
    itemsize = jnp.dtype(x.dtype).itemsize
    sublane = _sublane_multiple(x.dtype)
    cfg = _chip_config()

    # Rows per tile: fill the per-step tile budget (D-aware), dtype-correct
    # sublane multiple, generous row cap so small-D inputs still get big DMAs.
    rows = cfg["tile_budget"] // max(1, D * itemsize)
    tb = max(sublane, (rows // sublane) * sublane)
    tb = min(tb, 4096)                       # keep vreg / layout pressure sane
    tb = min(tb, _round_up(B, sublane))      # never larger than the (rounded) batch
    # TODO(synk): for D so large that a single sublane-min row tile exceeds the
    # budget (D > ~256K f32), add an "arbitrary" grid axis over D with a VMEM
    # f32 accumulator; full-D row tiles are fine below that.

    grid = (pl.cdiv(B, tb),)                 # ragged last block handled by clamping

    out = pl.pallas_call(
        value_head_kernel,
        out_shape=jax.ShapeDtypeStruct((B, 1), x.dtype),
        grid=grid,
        in_specs=[
            pl.BlockSpec((tb, D), lambda i: (i, 0)),            # streamed x tile
            pl.BlockSpec((1, D), lambda i: (0, 0)),             # resident lane-dense weight
            pl.BlockSpec(memory_space=pltpu.MemorySpace.SMEM),  # scalar bias in SMEM
        ],
        out_specs=pl.BlockSpec((tb, 1), lambda i: (i, 0)),
        compiler_params=pltpu.CompilerParams(
            dimension_semantics=cfg["dims"],
            vmem_limit_bytes=cfg["vmem_limit"],
        ),
        cost_estimate=pl.CostEstimate(
            flops=2 * B * D,
            transcendentals=0,
            bytes_accessed=B * D * itemsize
            + D * jnp.dtype(w_row.dtype).itemsize
            + B * itemsize,
        ),
    )(x, w_row, b)

    # squeeze(-1): (B, 1) -> (B,)
    return out[:, 0]


if __name__ == "__main__":
    B, D = 2, 32  # batch=2, hidden=32

    key = jax.random.PRNGKey(0)
    kx, kw, kb = jax.random.split(key, 3)

    # Deterministic parameter init mimicking nn.Linear default:
    # U(-1/sqrt(D), 1/sqrt(D)) for both weight and bias.
    bound = 1.0 / jnp.sqrt(jnp.float32(D))
    w = jax.random.uniform(kw, (1, D), jnp.float32, -bound, bound)  # torch weight (out=1, in=D)
    b = jax.random.uniform(kb, (1,), jnp.float32, -bound, bound)    # torch bias (1,)

    x = jax.random.normal(kx, (B, D), jnp.float32)

    value = jax.block_until_ready(value_head(x, w, b))

    # Pure-JAX reference check
    ref = (x @ w.T + b)[..., 0]
    assert value.shape == (B,)
    assert jnp.allclose(value, ref, atol=1e-5, rtol=1e-5)

    print("KERNEL_OK")
</pallas_src>

<mosaic_0001>
module attributes {stable_mosaic.version = 11 : i64} {
  func.func @value_head_kernel(%arg0: i32, %arg1: memref<8x32xf32, #tpu.memory_space<vmem>>, %arg2: memref<1x32xf32, #tpu.memory_space<vmem>>, %arg3: memref<1xf32, #tpu.memory_space<smem>>, %arg4: memref<8x1xf32, #tpu.memory_space<vmem>>) attributes {dimension_semantics = [#tpu.dimension_semantics<parallel>], iteration_bounds = array<i64: 1>, scalar_prefetch = 0 : i64, scratch_operands = 0 : i64, tpu.core_type = #tpu.core_type<tc>, window_params = [{transform_indices = @transform_0, window_bounds = array<i64: 8, 32>}, {pipeline_mode = #tpu.pipeline_mode<synchronous>, transform_indices = @transform_1, window_bounds = array<i64: 1, 32>}, {transform_indices = @transform_2, window_bounds = array<i64: 1>}, {transform_indices = @transform_3, window_bounds = array<i64: 8, 1>}]} {
    %c0 = arith.constant 0 : index
    %c0_0 = arith.constant 0 : index
    %0 = vector.load %arg1[%c0, %c0_0] : memref<8x32xf32, #tpu.memory_space<vmem>>, vector<8x32xf32>
    %c0_1 = arith.constant 0 : index
    %c0_2 = arith.constant 0 : index
    %1 = vector.load %arg2[%c0_1, %c0_2] : memref<1x32xf32, #tpu.memory_space<vmem>>, vector<1x32xf32>
    %2 = vector.broadcast %1 : vector<1x32xf32> to vector<8x32xf32>
    %3 = arith.mulf %0, %2 : vector<8x32xf32>
    %cst = arith.constant dense<0.000000e+00> : vector<8xf32>
    %4 = vector.multi_reduction <add>, %3, %cst [1] : vector<8x32xf32> to vector<8xf32>
    %5 = vector.shape_cast %4 : vector<8xf32> to vector<8x1xf32>
    %c0_3 = arith.constant 0 : index
    %6 = memref.load %arg3[%c0_3] : memref<1xf32, #tpu.memory_space<smem>>
    %7 = vector.broadcast %6 : f32 to vector<8x1xf32>
    %8 = arith.addf %5, %7 : vector<8x1xf32>
    %c0_4 = arith.constant 0 : index
    %c0_5 = arith.constant 0 : index
    %9 = vector.load %arg4[%c0_4, %c0_5] : memref<8x1xf32, #tpu.memory_space<vmem>>, vector<8x1xf32>
    tpu.vector_store %arg4[%c0_4, %c0_5], %8 {strides = array<i32>} : memref<8x1xf32, #tpu.memory_space<vmem>>, vector<8x1xf32>,
    return
  }
  func.func @transform_0(%arg0: i32) -> (i32, i32) {
    %c0_i32 = arith.constant 0 : i32
    %c0_i32_0 = arith.constant 0 : i32
    return %arg0, %c0_i32 : i32, i32
  }
  func.func @transform_1(%arg0: i32) -> (i32, i32) {
    %c0_i32 = arith.constant 0 : i32
    %c0_i32_0 = arith.constant 0 : i32
    %c0_i32_1 = arith.constant 0 : i32
    return %c0_i32, %c0_i32_0 : i32, i32
  }
  func.func @transform_2(%arg0: i32) -> i32 {
    %c0_i32 = arith.constant 0 : i32
    %c0_i32_0 = arith.constant 0 : i32
    return %c0_i32 : i32
  }
  func.func @transform_3(%arg0: i32) -> (i32, i32) {
    %c0_i32 = arith.constant 0 : i32
    %c0_i32_0 = arith.constant 0 : i32
    return %arg0, %c0_i32 : i32, i32
  }
}

</mosaic_0001>

<llo_original>
// kernel: tpu_custom_call.1
$region0: #{tpu_custom_call.1}
  #allocation0 [shape = 'u32[]', space=smem, size = 0x4, offset = 0x4, fixed_abs, tag = 'smem constant byte address 0x4 - core index']
  #allocation1 [shape = 'u32[144,128]{1,0:T(1,128)}', space=vmem, size = 0x12000, scoped, tag = 'internal scratch']
  #allocation2 [shape = 'f32[1]{0:T(128)S(6)}', space=smem, size = 0x200, scoped, tag = 'scoped memory for tpu_custom_call.1']
  %s0 = inlined_call_operand.vmem [shape: f32[2,32], index: 0, kind: input, shape index: {}]
  %s1 = inlined_call_operand.vmem [shape: f32[1,32], index: 1, kind: input, shape index: {}]
  %s2 = inlined_call_operand.<no memory space> [shape: f32[1], index: 2, kind: input, shape index: {}]
  %s3 = inlined_call_operand.vmem [shape: f32[2,1], index: 3, kind: output, shape index: {}]
  %s4 = sld [smem:[#allocation0]]
  $region52: #{tpu_custom_call.1} parent=0
    _
  %s6 = ssub.s32 1, %s4
  %s7 = scalar_select 0, %s6, %s4
  %8 = sst [smem:[#allocation2]] %s2
  $region1: #{tpu_custom_call.1} parent=0
    #allocation3 [shape = 'u8[4096]{0}', space=vmem, size = 0x1000, scoped, tag = 'output window, operand 0, single buffered']
    // Predicated region
    $region2: #{tpu_custom_call.1} parent=1 // pred_check
      _
    $region3: #{tpu_custom_call.1} parent=1 // pred_check_branch
      %10 = sbr.rel (0) target = $region5
    $region4: #{tpu_custom_call.1} parent=1 // pred_region
      _
    $region5: #{tpu_custom_call.1} parent=1 // pred_fallthru
      _
    // Predicated region
    $region6: #{tpu_custom_call.1} parent=1 // pred_check
      _
    $region7: #{tpu_custom_call.1} parent=1 // pred_check_branch
      %12 = sbr.rel (0) target = $region9
    $region8: #{tpu_custom_call.1} parent=1 // pred_region
      _
    $region9: #{tpu_custom_call.1} parent=1 // pred_fallthru
      _
    // Predicated region
    $region10: #{tpu_custom_call.1} parent=1 // pred_check
      _
    $region11: #{tpu_custom_call.1} parent=1 // pred_check_branch
      %14 = sbr.rel (0) target = $region13
    $region12: #{tpu_custom_call.1} parent=1 // pred_region
      _
    $region13: #{tpu_custom_call.1} parent=1 // pred_fallthru
      _
    %v15 = vld [vmem:[%s0] sm:$0xff]
    %v16 = vld [vmem:[%s1] sm:$0x1]
    %v18 = vlaneseq
    %v19 = vshrl.u32 %v18, 7
    %v20 = vsub.s32 0, %v19
    %v21 = vrot.slane %v16, %v20
    %v23 = vmul.f32 %v15, %v21
    %vm24 = vcmask 261120
    %v25 = vsel %vm24, %v23, 0.0
    %26 = vadd.xlane.f32.xlu0 %v25
    %v27 = vpop.xlane.xlu0 %26
    %s28 = sld [smem:[#allocation2]]
    %v29 = vstv %s28
    %v30 = vadd.f32 %v27, %v29
    %vm31 = vcmask 7168
    %32 = vst.msk [vmem:[#allocation3] sm:$0xff] %vm31, %v30
    // Predicated region
    $region14: #{tpu_custom_call.1} parent=1 // pred_check
      _
    $region15: #{tpu_custom_call.1} parent=1 // pred_check_branch
      %34 = sbr.rel (0) target = $region17
    $region16: #{tpu_custom_call.1} parent=1 // pred_region
      // Predicated region
      $region18: #{tpu_custom_call.1} parent=16 // pred_check
        _
      $region19: #{tpu_custom_call.1} parent=16 // pred_check_branch
        %36 = sbr.rel (0) target = $region21
      $region20: #{tpu_custom_call.1} parent=16 // pred_region
        // Predicated region
        $region22: #{tpu_custom_call.1} parent=20 // pred_check
          _
        $region23: #{tpu_custom_call.1} parent=20 // pred_check_branch
          %38 = sbr.rel target = $region25
        $region24: #{tpu_custom_call.1} parent=20 // pred_region
          // Predicated region
          $region37: #{tpu_custom_call.1} parent=24 // pred_check
            _
          $region38: #{tpu_custom_call.1} parent=24 // pred_check_branch
            %54 = sbr.rel (0) target = $region40
          $region39: #{tpu_custom_call.1} parent=24 // pred_region
            %s56 = ssub.s32 4, 1
            loop: start=0, step=1, limit=1
            $region41: #{tpu_custom_call.1} parent=39 // loop_pre_header
              _
            $region42: #{tpu_custom_call.1} parent=39 // loop_header
              %s58 = sphi 0, %s62
              %p59 = scmp.ge.s32.totalorder %s58, 1
              %s63 = sphi [#allocation3], [#allocation3]
              %s64 = sphi %s3, %s3
            $region43: #{tpu_custom_call.1} parent=39 // loop_header_branch
              %61 = sbr.rel (%p59) target = $region47
            $region44: #{tpu_custom_call.1} parent=39 // loop_body
              %v65 = vld [vmem:[%s63] sm:%s56]
              %66 = vst [vmem:[%s64] sm:%s56] %v65
            $region45: #{tpu_custom_call.1} parent=39 // loop_footer
              %s62 = sadd.s32 1, %s58
            $region46: #{tpu_custom_call.1} parent=39 // loop_footer_branch
              %57 = sbr.rel target = $region42
            $region47: #{tpu_custom_call.1} parent=39 // loop_exit
              _
          $region40: #{tpu_custom_call.1} parent=24 // pred_fallthru
            _
        $region25: #{tpu_custom_call.1} parent=20 // pred_fallthru
          _
        // Predicated region
        $region26: #{tpu_custom_call.1} parent=20 // pred_check
          _
        $region27: #{tpu_custom_call.1} parent=20 // pred_check_branch
          %40 = sbr.rel (0) target = $region29
        $region28: #{tpu_custom_call.1} parent=20 // pred_region
          %s42 = ssub.s32 4, 1
          loop: start=0, step=1, limit=1
          $region30: #{tpu_custom_call.1} parent=28 // loop_pre_header
            _
          $region31: #{tpu_custom_call.1} parent=28 // loop_header
            %s44 = sphi 0, %s48
            %p45 = scmp.ge.s32.totalorder %s44, 1
            %s49 = sphi [#allocation3], [#allocation3]
            %s50 = sphi %s3, %s3
          $region32: #{tpu_custom_call.1} parent=28 // loop_header_branch
            %47 = sbr.rel (%p45) target = $region36
          $region33: #{tpu_custom_call.1} parent=28 // loop_body
            %v51 = vld [vmem:[%s49] sm:%s42]
            %52 = vst [vmem:[%s50] sm:%s42] %v51
          $region34: #{tpu_custom_call.1} parent=28 // loop_footer
            %s48 = sadd.s32 1, %s44
          $region35: #{tpu_custom_call.1} parent=28 // loop_footer_branch
            %43 = sbr.rel target = $region31
          $region36: #{tpu_custom_call.1} parent=28 // loop_exit
            _
        $region29: #{tpu_custom_call.1} parent=20 // pred_fallthru
          _
      $region21: #{tpu_custom_call.1} parent=16 // pred_fallthru
        _
      %67 = vnop
    $region17: #{tpu_custom_call.1} parent=1 // pred_fallthru
      _
    // Predicated region
    $region48: #{tpu_custom_call.1} parent=1 // pred_check
      _
    $region49: #{tpu_custom_call.1} parent=1 // pred_check_branch
      %69 = sbr.rel (0) target = $region51
    $region50: #{tpu_custom_call.1} parent=1 // pred_region
      _
    $region51: #{tpu_custom_call.1} parent=1 // pred_fallthru
      _

</llo_original>
